<compile_context>
chip_gen: v5e
topology: v5e:2x2
jax: 0.10.0
libtpu: 0.0.40
codegen_flags: <defaults>
</compile_context>

<pallas_src>
import functools

import jax
import jax.numpy as jnp
from jax.experimental import pallas as pl
from jax.experimental.pallas import tpu as pltpu


def transformer_block_kernel(x_kv_ref, x_q_ref, wq_ref, wkv_ref, wo_ref, bo_ref,
                             o_ref,
                             kv_scratch, q_scratch, ctx_scratch,
                             *, heads, scale):
    """Grid = (B, Tq): one (batch element, query tile) per grid step.

    x_kv_ref   : (1, N, D)  bf16  full-sequence activations (K/V source)
    x_q_ref    : (1, tq, D) bf16  query-tile activations
    wq_ref     : (D, D)     bf16  query projection weight  (out_features x in)
    wkv_ref    : (2D, D)    bf16  fused key/value projection weight
    wo_ref     : (D, D)     bf16  output projection weight
    bo_ref     : (1, D)     f32   output projection bias
    o_ref      : (1, tq, D)       output tile
    kv_scratch : (N, 2D)    bf16  K in lanes [0, D), V in lanes [D, 2D)
    q_scratch  : (tq, D)    bf16  scaled queries for this tile
    ctx_scratch: (tq, D)    bf16  merged-head attention outputs
    """
    qi = pl.program_id(1)
    D = wq_ref.shape[0]
    d = D // heads

    # K/V projection for the whole sequence, computed once per batch element.
    # The query-tile axis is "arbitrary" (sequential), so this scratch is
    # valid for every subsequent qi step of the same batch element.
    @pl.when(qi == 0)
    def _():
        kv_scratch[...] = jax.lax.dot_general(
            x_kv_ref[0], wkv_ref[...],
            dimension_numbers=(((1,), (1,)), ((), ())),
            preferred_element_type=jnp.float32).astype(kv_scratch.dtype)

    # Query projection for this tile; fold the softmax scale in once here
    # (saves heads * tq * N VPU multiplies on the score matrices).
    q_f32 = jax.lax.dot_general(
        x_q_ref[0], wq_ref[...],
        dimension_numbers=(((1,), (1,)), ((), ())),
        preferred_element_type=jnp.float32)
    q_scratch[...] = (q_f32 * scale).astype(q_scratch.dtype)

    # Per-head attention, statically unrolled.  Each head writes its output
    # straight into ctx_scratch (no concatenate -> bounded live ranges and a
    # single lane-dense operand for the output projection).
    for h in range(heads):
        qh = q_scratch[:, h * d:(h + 1) * d]             # (tq, d) bf16
        kh = kv_scratch[:, h * d:(h + 1) * d]            # (N, d)  bf16
        vh = kv_scratch[:, D + h * d:D + (h + 1) * d]    # (N, d)  bf16

        # Scores on the MXU with f32 accumulation: (tq, N).
        dots = jax.lax.dot_general(
            qh, kh, dimension_numbers=(((1,), (1,)), ((), ())),
            preferred_element_type=jnp.float32)

        # Numerically stable softmax in f32; reciprocal goes to the EUP slot.
        dots = dots - jnp.max(dots, axis=-1, keepdims=True)
        p = jnp.exp(dots)
        attn = p * pl.reciprocal(
            jnp.sum(p, axis=-1, keepdims=True), approx=True)

        # attn @ V in bf16 with f32 accumulation: (tq, d).
        ctx_scratch[:, h * d:(h + 1) * d] = jnp.dot(
            attn.astype(vh.dtype), vh,
            preferred_element_type=jnp.float32).astype(ctx_scratch.dtype)

    # Output projection + bias (bias kept in f32, added to the f32 accumulator).
    out = jax.lax.dot_general(
        ctx_scratch[...], wo_ref[...],
        dimension_numbers=(((1,), (1,)), ((), ())),
        preferred_element_type=jnp.float32) + bo_ref[...]

    # TODO(synk): nn.Dropout(p=dropout) is identity at inference / p=0.0, so
    # it is intentionally omitted here.
    o_ref[0] = out.astype(o_ref.dtype)


def transformer_block_pallas(x, wqkv, wo, bo, *, heads, tq=None):
    """x: (B, N, D); wqkv: (3D, D); wo: (D, D); bo: (D,)."""
    B, N, D = x.shape
    assert D % heads == 0, "model dim must be divisible by heads"
    d = D // heads
    scale = float(d) ** (-0.5)

    # Query-tile size: biggest 8-aligned tile up to 256 rows that divides N.
    if tq is None:
        tq = min(N, 256)
    if N % tq != 0 or tq % 8 != 0:
        tq = N                      # fall back to a single tile (small shapes)
    n_q_tiles = N // tq

    # Split the fused QKV weight into Q rows and (K, V) rows; cast all matmul
    # operands to bf16 once here (accumulation stays f32 inside the kernel).
    wq = wqkv[:D].astype(jnp.bfloat16)
    wkv = wqkv[D:].astype(jnp.bfloat16)
    wo_b = wo.astype(jnp.bfloat16)
    bo2 = bo.reshape(1, D).astype(jnp.float32)
    x_b = x.astype(jnp.bfloat16)

    kernel = functools.partial(transformer_block_kernel, heads=heads, scale=scale)

    # Advisory cost estimate (bytes computed from actual itemsizes).
    flops = B * (2 * N * D * (3 * D)        # Q + K/V projections
                 + 4 * N * N * D            # scores + attn @ v over all heads
                 + 2 * N * D * D)           # output projection
    transcendentals = B * heads * N * N     # softmax exps
    bytes_accessed = (2 * x_b.size * x_b.dtype.itemsize      # x read twice (Q + KV)
                      + x.size * x.dtype.itemsize            # output write
                      + (wq.size + wkv.size + wo_b.size) * 2 # bf16 weights
                      + bo2.size * 4)

    out = pl.pallas_call(
        kernel,
        out_shape=jax.ShapeDtypeStruct((B, N, D), x.dtype),
        grid_spec=pltpu.PrefetchScalarGridSpec(
            num_scalar_prefetch=0,
            grid=(B, n_q_tiles),
            in_specs=[
                pl.BlockSpec((1, N, D), lambda b, q: (b, 0, 0)),    # x (K/V src)
                pl.BlockSpec((1, tq, D), lambda b, q: (b, q, 0)),   # x (Q tile)
                pl.BlockSpec((D, D), lambda b, q: (0, 0)),          # W_q
                pl.BlockSpec((2 * D, D), lambda b, q: (0, 0)),      # W_kv
                pl.BlockSpec((D, D), lambda b, q: (0, 0)),          # W_o
                pl.BlockSpec((1, D), lambda b, q: (0, 0)),          # b_o
            ],
            out_specs=pl.BlockSpec((1, tq, D), lambda b, q: (b, q, 0)),
            scratch_shapes=[
                pltpu.VMEM((N, 2 * D), jnp.bfloat16),   # K/V for whole sequence
                pltpu.VMEM((tq, D), jnp.bfloat16),      # scaled Q tile
                pltpu.VMEM((tq, D), jnp.bfloat16),      # merged-head context
            ],
        ),
        compiler_params=pltpu.CompilerParams(
            dimension_semantics=("parallel", "arbitrary")),
        cost_estimate=pl.CostEstimate(
            flops=flops,
            transcendentals=transcendentals,
            bytes_accessed=bytes_accessed),
    )(x_b, x_b, wq, wkv, wo_b, bo2)
    return out


def transformer_block_ref(x, wqkv, wo, bo, *, heads):
    """Pure-JAX f32 reference mirroring the PyTorch forward."""
    B, N, D = x.shape
    d = D // heads
    scale = float(d) ** (-0.5)
    qkv = x @ wqkv.T                                   # (B, N, 3D)
    q, k, v = jnp.split(qkv, 3, axis=-1)

    def to_heads(t):
        return t.reshape(B, N, heads, d).transpose(0, 2, 1, 3)   # (B, h, N, d)

    q, k, v = map(to_heads, (q, k, v))
    dots = jnp.einsum('bhnd,bhmd->bhnm', q, k) * scale
    attn = jax.nn.softmax(dots, axis=-1)
    ctx = jnp.einsum('bhnm,bhmd->bhnd', attn, v)
    ctx = ctx.transpose(0, 2, 1, 3).reshape(B, N, D)
    return ctx @ wo.T + bo


if __name__ == "__main__":
    # Shapes consistent with TransformerBlock(dim=32, heads=8): d_head = 4.
    B, N, D, heads = 2, 8, 32, 8

    key = jax.random.PRNGKey(0)
    kx, k1, k2, k3 = jax.random.split(key, 4)

    x = jax.random.normal(kx, (B, N, D), dtype=jnp.float32)
    # Deterministic synthetic weights matching nn.Linear shapes.
    wqkv = jax.random.normal(k1, (3 * D, D), dtype=jnp.float32) * (1.0 / D ** 0.5)
    wo = jax.random.normal(k2, (D, D), dtype=jnp.float32) * (1.0 / D ** 0.5)
    bo = jax.random.normal(k3, (D,), dtype=jnp.float32) * 0.01

    out = transformer_block_pallas(x, wqkv, wo, bo, heads=heads)
    jax.block_until_ready(out)

    ref = transformer_block_ref(x, wqkv, wo, bo, heads=heads)
    assert out.shape == (B, N, D)
    # Tolerance loosened vs the f32 reference because matmul operands are bf16
    # (accumulation is f32 inside the kernel).
    assert jnp.allclose(out, ref, atol=5e-2, rtol=5e-2), "mismatch vs reference"

    print("KERNEL_OK")
</pallas_src>

<mosaic_0001>
module attributes {stable_mosaic.version = 11 : i64} {
  func.func @transformer_block_kernel(%arg0: i32, %arg1: i32, %arg2: memref<1x8x32xbf16, #tpu.memory_space<vmem>>, %arg3: memref<1x8x32xbf16, #tpu.memory_space<vmem>>, %arg4: memref<32x32xbf16, #tpu.memory_space<vmem>>, %arg5: memref<64x32xbf16, #tpu.memory_space<vmem>>, %arg6: memref<32x32xbf16, #tpu.memory_space<vmem>>, %arg7: memref<1x32xf32, #tpu.memory_space<vmem>>, %arg8: memref<1x8x32xf32, #tpu.memory_space<vmem>>, %arg9: memref<8x64xbf16, #tpu.memory_space<vmem>>, %arg10: memref<8x32xbf16, #tpu.memory_space<vmem>>, %arg11: memref<8x32xbf16, #tpu.memory_space<vmem>>) attributes {dimension_semantics = [#tpu.dimension_semantics<parallel>, #tpu.dimension_semantics<arbitrary>], iteration_bounds = array<i64: 2, 1>, scalar_prefetch = 0 : i64, scratch_operands = 3 : i64, tpu.core_type = #tpu.core_type<tc>, window_params = [{transform_indices = @transform_0, window_bounds = array<i64: 1, 8, 32>}, {transform_indices = @transform_1, window_bounds = array<i64: 1, 8, 32>}, {pipeline_mode = #tpu.pipeline_mode<synchronous>, transform_indices = @transform_2, window_bounds = array<i64: 32, 32>}, {pipeline_mode = #tpu.pipeline_mode<synchronous>, transform_indices = @transform_3, window_bounds = array<i64: 64, 32>}, {pipeline_mode = #tpu.pipeline_mode<synchronous>, transform_indices = @transform_4, window_bounds = array<i64: 32, 32>}, {pipeline_mode = #tpu.pipeline_mode<synchronous>, transform_indices = @transform_5, window_bounds = array<i64: 1, 32>}, {transform_indices = @transform_6, window_bounds = array<i64: 1, 8, 32>}]} {
    %c0_i32 = arith.constant 0 : i32
    %0 = arith.cmpi eq, %arg1, %c0_i32 : i32
    %1 = arith.extui %0 : i1 to i32
    %c0_i32_0 = arith.constant 0 : i32
    %2 = arith.cmpi ne, %1, %c0_i32_0 : i32
    scf.if %2 {
      %c0_99 = arith.constant 0 : index
      %c0_100 = arith.constant 0 : index
      %c0_101 = arith.constant 0 : index
      %164 = vector.load %arg2[%c0_99, %c0_100, %c0_101] : memref<1x8x32xbf16, #tpu.memory_space<vmem>>, vector<1x8x32xbf16>
      %165 = vector.shape_cast %164 : vector<1x8x32xbf16> to vector<8x32xbf16>
      %c0_102 = arith.constant 0 : index
      %c0_103 = arith.constant 0 : index
      %166 = vector.load %arg5[%c0_102, %c0_103] : memref<64x32xbf16, #tpu.memory_space<vmem>>, vector<64x32xbf16>
      %cst_104 = arith.constant dense<0.000000e+00> : vector<8x64xf32>
      %167 = tpu.matmul %165, %166, %cst_104 {dimension_numbers = #tpu.dot_dimension_numbers<[1], [1], [0], [0], [0, 0, 1, 0], [], []>} : vector<8x32xbf16>, vector<64x32xbf16>, vector<8x64xf32> -> vector<8x64xf32>
      %168 = arith.truncf %167 : vector<8x64xf32> to vector<8x64xbf16>
      %c0_105 = arith.constant 0 : index
      %c0_106 = arith.constant 0 : index
      %169 = vector.load %arg9[%c0_105, %c0_106] : memref<8x64xbf16, #tpu.memory_space<vmem>>, vector<8x64xbf16>
      tpu.vector_store %arg9[%c0_105, %c0_106], %168 {strides = array<i32>} : memref<8x64xbf16, #tpu.memory_space<vmem>>, vector<8x64xbf16>,
    } else {
    }
    %c0 = arith.constant 0 : index
    %c0_1 = arith.constant 0 : index
    %c0_2 = arith.constant 0 : index
    %3 = vector.load %arg3[%c0, %c0_1, %c0_2] : memref<1x8x32xbf16, #tpu.memory_space<vmem>>, vector<1x8x32xbf16>
    %4 = vector.shape_cast %3 : vector<1x8x32xbf16> to vector<8x32xbf16>
    %c0_3 = arith.constant 0 : index
    %c0_4 = arith.constant 0 : index
    %5 = vector.load %arg4[%c0_3, %c0_4] : memref<32x32xbf16, #tpu.memory_space<vmem>>, vector<32x32xbf16>
    %cst = arith.constant dense<0.000000e+00> : vector<8x32xf32>
    %6 = tpu.matmul %4, %5, %cst {dimension_numbers = #tpu.dot_dimension_numbers<[1], [1], [0], [0], [0, 0, 1, 0], [], []>} : vector<8x32xbf16>, vector<32x32xbf16>, vector<8x32xf32> -> vector<8x32xf32>
    %cst_5 = arith.constant 5.000000e-01 : f32
    %7 = vector.broadcast %cst_5 : f32 to vector<8x32xf32>
    %8 = arith.mulf %6, %7 : vector<8x32xf32>
    %9 = arith.truncf %8 : vector<8x32xf32> to vector<8x32xbf16>
    %c0_6 = arith.constant 0 : index
    %c0_7 = arith.constant 0 : index
    %10 = vector.load %arg10[%c0_6, %c0_7] : memref<8x32xbf16, #tpu.memory_space<vmem>>, vector<8x32xbf16>
    tpu.vector_store %arg10[%c0_6, %c0_7], %9 {strides = array<i32>} : memref<8x32xbf16, #tpu.memory_space<vmem>>, vector<8x32xbf16>,
    %c0_8 = arith.constant 0 : index
    %c0_9 = arith.constant 0 : index
    %11 = vector.load %arg10[%c0_8, %c0_9] : memref<8x32xbf16, #tpu.memory_space<vmem>>, vector<8x4xbf16>
    %c0_10 = arith.constant 0 : index
    %c0_11 = arith.constant 0 : index
    %12 = vector.load %arg9[%c0_10, %c0_11] : memref<8x64xbf16, #tpu.memory_space<vmem>>, vector<8x4xbf16>
    %c0_12 = arith.constant 0 : index
    %c32 = arith.constant 32 : index
    %13 = vector.load %arg9[%c0_12, %c32] : memref<8x64xbf16, #tpu.memory_space<vmem>>, vector<8x4xbf16>
    %cst_13 = arith.constant dense<0.000000e+00> : vector<8x8xf32>
    %14 = tpu.matmul %11, %12, %cst_13 {dimension_numbers = #tpu.dot_dimension_numbers<[1], [1], [0], [0], [0, 0, 1, 0], [], []>} : vector<8x4xbf16>, vector<8x4xbf16>, vector<8x8xf32> -> vector<8x8xf32>
    %cst_14 = arith.constant dense<0xFF800000> : vector<8xf32>
    %15 = vector.multi_reduction <maximumf>, %14, %cst_14 [1] : vector<8x8xf32> to vector<8xf32>
    %16 = vector.shape_cast %15 : vector<8xf32> to vector<8x1xf32>
    %17 = vector.broadcast %16 : vector<8x1xf32> to vector<8x8xf32>
    %18 = arith.subf %14, %17 : vector<8x8xf32>
    %19 = math.exp %18 : vector<8x8xf32>
    %cst_15 = arith.constant dense<0.000000e+00> : vector<8xf32>
    %20 = vector.multi_reduction <add>, %19, %cst_15 [1] : vector<8x8xf32> to vector<8xf32>
    %21 = vector.shape_cast %20 : vector<8xf32> to vector<8x1xf32>
    %22 = tpu.reciprocal %21 {approx = true} : vector<8x1xf32> -> vector<8x1xf32>
    %23 = vector.broadcast %22 : vector<8x1xf32> to vector<8x8xf32>
    %24 = arith.mulf %19, %23 : vector<8x8xf32>
    %25 = arith.truncf %24 : vector<8x8xf32> to vector<8x8xbf16>
    %cst_16 = arith.constant dense<0.000000e+00> : vector<8x4xf32>
    %26 = tpu.matmul %25, %13, %cst_16 {dimension_numbers = #tpu.dot_dimension_numbers<[1], [0], [0], [1], [0, 0, 1, 1], [], []>} : vector<8x8xbf16>, vector<8x4xbf16>, vector<8x4xf32> -> vector<8x4xf32>
    %27 = arith.truncf %26 : vector<8x4xf32> to vector<8x4xbf16>
    %c0_17 = arith.constant 0 : index
    %c0_18 = arith.constant 0 : index
    %28 = vector.load %arg11[%c0_17, %c0_18] : memref<8x32xbf16, #tpu.memory_space<vmem>>, vector<8x4xbf16>
    tpu.vector_store %arg11[%c0_17, %c0_18], %27 {strides = array<i32>} : memref<8x32xbf16, #tpu.memory_space<vmem>>, vector<8x4xbf16>,
    %c0_19 = arith.constant 0 : index
    %c4 = arith.constant 4 : index
    %29 = vector.load %arg10[%c0_19, %c4] : memref<8x32xbf16, #tpu.memory_space<vmem>>, vector<8x4xbf16>
    %c0_20 = arith.constant 0 : index
    %c4_21 = arith.constant 4 : index
    %30 = vector.load %arg9[%c0_20, %c4_21] : memref<8x64xbf16, #tpu.memory_space<vmem>>, vector<8x4xbf16>
    %c0_22 = arith.constant 0 : index
    %c36 = arith.constant 36 : index
    %31 = vector.load %arg9[%c0_22, %c36] : memref<8x64xbf16, #tpu.memory_space<vmem>>, vector<8x4xbf16>
    %cst_23 = arith.constant dense<0.000000e+00> : vector<8x8xf32>
    %32 = tpu.matmul %29, %30, %cst_23 {dimension_numbers = #tpu.dot_dimension_numbers<[1], [1], [0], [0], [0, 0, 1, 0], [], []>} : vector<8x4xbf16>, vector<8x4xbf16>, vector<8x8xf32> -> vector<8x8xf32>
    %cst_24 = arith.constant dense<0xFF800000> : vector<8xf32>
    %33 = vector.multi_reduction <maximumf>, %32, %cst_24 [1] : vector<8x8xf32> to vector<8xf32>
    %34 = vector.shape_cast %33 : vector<8xf32> to vector<8x1xf32>
    %35 = vector.broadcast %34 : vector<8x1xf32> to vector<8x8xf32>
    %36 = arith.subf %32, %35 : vector<8x8xf32>
    %37 = math.exp %36 : vector<8x8xf32>
    %cst_25 = arith.constant dense<0.000000e+00> : vector<8xf32>
    %38 = vector.multi_reduction <add>, %37, %cst_25 [1] : vector<8x8xf32> to vector<8xf32>
    %39 = vector.shape_cast %38 : vector<8xf32> to vector<8x1xf32>
    %40 = tpu.reciprocal %39 {approx = true} : vector<8x1xf32> -> vector<8x1xf32>
    %41 = vector.broadcast %40 : vector<8x1xf32> to vector<8x8xf32>
    %42 = arith.mulf %37, %41 : vector<8x8xf32>
    %43 = arith.truncf %42 : vector<8x8xf32> to vector<8x8xbf16>
    %cst_26 = arith.constant dense<0.000000e+00> : vector<8x4xf32>
    %44 = tpu.matmul %43, %31, %cst_26 {dimension_numbers = #tpu.dot_dimension_numbers<[1], [0], [0], [1], [0, 0, 1, 1], [], []>} : vector<8x8xbf16>, vector<8x4xbf16>, vector<8x4xf32> -> vector<8x4xf32>
    %45 = arith.truncf %44 : vector<8x4xf32> to vector<8x4xbf16>
    %c0_27 = arith.constant 0 : index
    %c4_28 = arith.constant 4 : index
    %46 = vector.load %arg11[%c0_27, %c4_28] : memref<8x32xbf16, #tpu.memory_space<vmem>>, vector<8x4xbf16>
    tpu.vector_store %arg11[%c0_27, %c4_28], %45 {strides = array<i32>} : memref<8x32xbf16, #tpu.memory_space<vmem>>, vector<8x4xbf16>,
    %c0_29 = arith.constant 0 : index
    %c8 = arith.constant 8 : index
    %47 = vector.load %arg10[%c0_29, %c8] : memref<8x32xbf16, #tpu.memory_space<vmem>>, vector<8x4xbf16>
    %c0_30 = arith.constant 0 : index
    %c8_31 = arith.constant 8 : index
    %48 = vector.load %arg9[%c0_30, %c8_31] : memref<8x64xbf16, #tpu.memory_space<vmem>>, vector<8x4xbf16>
    %c0_32 = arith.constant 0 : index
    %c40 = arith.constant 40 : index
    %49 = vector.load %arg9[%c0_32, %c40] : memref<8x64xbf16, #tpu.memory_space<vmem>>, vector<8x4xbf16>
    %cst_33 = arith.constant dense<0.000000e+00> : vector<8x8xf32>
    %50 = tpu.matmul %47, %48, %cst_33 {dimension_numbers = #tpu.dot_dimension_numbers<[1], [1], [0], [0], [0, 0, 1, 0], [], []>} : vector<8x4xbf16>, vector<8x4xbf16>, vector<8x8xf32> -> vector<8x8xf32>
    %cst_34 = arith.constant dense<0xFF800000> : vector<8xf32>
    %51 = vector.multi_reduction <maximumf>, %50, %cst_34 [1] : vector<8x8xf32> to vector<8xf32>
    %52 = vector.shape_cast %51 : vector<8xf32> to vector<8x1xf32>
    %53 = vector.broadcast %52 : vector<8x1xf32> to vector<8x8xf32>
    %54 = arith.subf %50, %53 : vector<8x8xf32>
    %55 = math.exp %54 : vector<8x8xf32>
    %cst_35 = arith.constant dense<0.000000e+00> : vector<8xf32>
    %56 = vector.multi_reduction <add>, %55, %cst_35 [1] : vector<8x8xf32> to vector<8xf32>
    %57 = vector.shape_cast %56 : vector<8xf32> to vector<8x1xf32>
    %58 = tpu.reciprocal %57 {approx = true} : vector<8x1xf32> -> vector<8x1xf32>
    %59 = vector.broadcast %58 : vector<8x1xf32> to vector<8x8xf32>
    %60 = arith.mulf %55, %59 : vector<8x8xf32>
    %61 = arith.truncf %60 : vector<8x8xf32> to vector<8x8xbf16>
    %cst_36 = arith.constant dense<0.000000e+00> : vector<8x4xf32>
    %62 = tpu.matmul %61, %49, %cst_36 {dimension_numbers = #tpu.dot_dimension_numbers<[1], [0], [0], [1], [0, 0, 1, 1], [], []>} : vector<8x8xbf16>, vector<8x4xbf16>, vector<8x4xf32> -> vector<8x4xf32>
    %63 = arith.truncf %62 : vector<8x4xf32> to vector<8x4xbf16>
    %c0_37 = arith.constant 0 : index
    %c8_38 = arith.constant 8 : index
    %64 = vector.load %arg11[%c0_37, %c8_38] : memref<8x32xbf16, #tpu.memory_space<vmem>>, vector<8x4xbf16>
    tpu.vector_store %arg11[%c0_37, %c8_38], %63 {strides = array<i32>} : memref<8x32xbf16, #tpu.memory_space<vmem>>, vector<8x4xbf16>,
    %c0_39 = arith.constant 0 : index
    %c12 = arith.constant 12 : index
    %65 = vector.load %arg10[%c0_39, %c12] : memref<8x32xbf16, #tpu.memory_space<vmem>>, vector<8x4xbf16>
    %c0_40 = arith.constant 0 : index
    %c12_41 = arith.constant 12 : index
    %66 = vector.load %arg9[%c0_40, %c12_41] : memref<8x64xbf16, #tpu.memory_space<vmem>>, vector<8x4xbf16>
    %c0_42 = arith.constant 0 : index
    %c44 = arith.constant 44 : index
    %67 = vector.load %arg9[%c0_42, %c44] : memref<8x64xbf16, #tpu.memory_space<vmem>>, vector<8x4xbf16>
    %cst_43 = arith.constant dense<0.000000e+00> : vector<8x8xf32>
    %68 = tpu.matmul %65, %66, %cst_43 {dimension_numbers = #tpu.dot_dimension_numbers<[1], [1], [0], [0], [0, 0, 1, 0], [], []>} : vector<8x4xbf16>, vector<8x4xbf16>, vector<8x8xf32> -> vector<8x8xf32>
    %cst_44 = arith.constant dense<0xFF800000> : vector<8xf32>
    %69 = vector.multi_reduction <maximumf>, %68, %cst_44 [1] : vector<8x8xf32> to vector<8xf32>
    %70 = vector.shape_cast %69 : vector<8xf32> to vector<8x1xf32>
    %71 = vector.broadcast %70 : vector<8x1xf32> to vector<8x8xf32>
    %72 = arith.subf %68, %71 : vector<8x8xf32>
    %73 = math.exp %72 : vector<8x8xf32>
    %cst_45 = arith.constant dense<0.000000e+00> : vector<8xf32>
    %74 = vector.multi_reduction <add>, %73, %cst_45 [1] : vector<8x8xf32> to vector<8xf32>
    %75 = vector.shape_cast %74 : vector<8xf32> to vector<8x1xf32>
    %76 = tpu.reciprocal %75 {approx = true} : vector<8x1xf32> -> vector<8x1xf32>
    %77 = vector.broadcast %76 : vector<8x1xf32> to vector<8x8xf32>
    %78 = arith.mulf %73, %77 : vector<8x8xf32>
    %79 = arith.truncf %78 : vector<8x8xf32> to vector<8x8xbf16>
    %cst_46 = arith.constant dense<0.000000e+00> : vector<8x4xf32>
    %80 = tpu.matmul %79, %67, %cst_46 {dimension_numbers = #tpu.dot_dimension_numbers<[1], [0], [0], [1], [0, 0, 1, 1], [], []>} : vector<8x8xbf16>, vector<8x4xbf16>, vector<8x4xf32> -> vector<8x4xf32>
    %81 = arith.truncf %80 : vector<8x4xf32> to vector<8x4xbf16>
    %c0_47 = arith.constant 0 : index
    %c12_48 = arith.constant 12 : index
    %82 = vector.load %arg11[%c0_47, %c12_48] : memref<8x32xbf16, #tpu.memory_space<vmem>>, vector<8x4xbf16>
    tpu.vector_store %arg11[%c0_47, %c12_48], %81 {strides = array<i32>} : memref<8x32xbf16, #tpu.memory_space<vmem>>, vector<8x4xbf16>,
    %c0_49 = arith.constant 0 : index
    %c16 = arith.constant 16 : index
    %83 = vector.load %arg10[%c0_49, %c16] : memref<8x32xbf16, #tpu.memory_space<vmem>>, vector<8x4xbf16>
    %c0_50 = arith.constant 0 : index
    %c16_51 = arith.constant 16 : index
    %84 = vector.load %arg9[%c0_50, %c16_51] : memref<8x64xbf16, #tpu.memory_space<vmem>>, vector<8x4xbf16>
    %c0_52 = arith.constant 0 : index
    %c48 = arith.constant 48 : index
    %85 = vector.load %arg9[%c0_52, %c48] : memref<8x64xbf16, #tpu.memory_space<vmem>>, vector<8x4xbf16>
    %cst_53 = arith.constant dense<0.000000e+00> : vector<8x8xf32>
    %86 = tpu.matmul %83, %84, %cst_53 {dimension_numbers = #tpu.dot_dimension_numbers<[1], [1], [0], [0], [0, 0, 1, 0], [], []>} : vector<8x4xbf16>, vector<8x4xbf16>, vector<8x8xf32> -> vector<8x8xf32>
    %cst_54 = arith.constant dense<0xFF800000> : vector<8xf32>
    %87 = vector.multi_reduction <maximumf>, %86, %cst_54 [1] : vector<8x8xf32> to vector<8xf32>
    %88 = vector.shape_cast %87 : vector<8xf32> to vector<8x1xf32>
    %89 = vector.broadcast %88 : vector<8x1xf32> to vector<8x8xf32>
    %90 = arith.subf %86, %89 : vector<8x8xf32>
    %91 = math.exp %90 : vector<8x8xf32>
    %cst_55 = arith.constant dense<0.000000e+00> : vector<8xf32>
    %92 = vector.multi_reduction <add>, %91, %cst_55 [1] : vector<8x8xf32> to vector<8xf32>
    %93 = vector.shape_cast %92 : vector<8xf32> to vector<8x1xf32>
    %94 = tpu.reciprocal %93 {approx = true} : vector<8x1xf32> -> vector<8x1xf32>
    %95 = vector.broadcast %94 : vector<8x1xf32> to vector<8x8xf32>
    %96 = arith.mulf %91, %95 : vector<8x8xf32>
    %97 = arith.truncf %96 : vector<8x8xf32> to vector<8x8xbf16>
    %cst_56 = arith.constant dense<0.000000e+00> : vector<8x4xf32>
    %98 = tpu.matmul %97, %85, %cst_56 {dimension_numbers = #tpu.dot_dimension_numbers<[1], [0], [0], [1], [0, 0, 1, 1], [], []>} : vector<8x8xbf16>, vector<8x4xbf16>, vector<8x4xf32> -> vector<8x4xf32>
    %99 = arith.truncf %98 : vector<8x4xf32> to vector<8x4xbf16>
    %c0_57 = arith.constant 0 : index
    %c16_58 = arith.constant 16 : index
    %100 = vector.load %arg11[%c0_57, %c16_58] : memref<8x32xbf16, #tpu.memory_space<vmem>>, vector<8x4xbf16>
    tpu.vector_store %arg11[%c0_57, %c16_58], %99 {strides = array<i32>} : memref<8x32xbf16, #tpu.memory_space<vmem>>, vector<8x4xbf16>,
    %c0_59 = arith.constant 0 : index
    %c20 = arith.constant 20 : index
    %101 = vector.load %arg10[%c0_59, %c20] : memref<8x32xbf16, #tpu.memory_space<vmem>>, vector<8x4xbf16>
    %c0_60 = arith.constant 0 : index
    %c20_61 = arith.constant 20 : index
    %102 = vector.load %arg9[%c0_60, %c20_61] : memref<8x64xbf16, #tpu.memory_space<vmem>>, vector<8x4xbf16>
    %c0_62 = arith.constant 0 : index
    %c52 = arith.constant 52 : index
    %103 = vector.load %arg9[%c0_62, %c52] : memref<8x64xbf16, #tpu.memory_space<vmem>>, vector<8x4xbf16>
    %cst_63 = arith.constant dense<0.000000e+00> : vector<8x8xf32>
    %104 = tpu.matmul %101, %102, %cst_63 {dimension_numbers = #tpu.dot_dimension_numbers<[1], [1], [0], [0], [0, 0, 1, 0], [], []>} : vector<8x4xbf16>, vector<8x4xbf16>, vector<8x8xf32> -> vector<8x8xf32>
    %cst_64 = arith.constant dense<0xFF800000> : vector<8xf32>
    %105 = vector.multi_reduction <maximumf>, %104, %cst_64 [1] : vector<8x8xf32> to vector<8xf32>
    %106 = vector.shape_cast %105 : vector<8xf32> to vector<8x1xf32>
    %107 = vector.broadcast %106 : vector<8x1xf32> to vector<8x8xf32>
    %108 = arith.subf %104, %107 : vector<8x8xf32>
    %109 = math.exp %108 : vector<8x8xf32>
    %cst_65 = arith.constant dense<0.000000e+00> : vector<8xf32>
    %110 = vector.multi_reduction <add>, %109, %cst_65 [1] : vector<8x8xf32> to vector<8xf32>
    %111 = vector.shape_cast %110 : vector<8xf32> to vector<8x1xf32>
    %112 = tpu.reciprocal %111 {approx = true} : vector<8x1xf32> -> vector<8x1xf32>
    %113 = vector.broadcast %112 : vector<8x1xf32> to vector<8x8xf32>
    %114 = arith.mulf %109, %113 : vector<8x8xf32>
    %115 = arith.truncf %114 : vector<8x8xf32> to vector<8x8xbf16>
    %cst_66 = arith.constant dense<0.000000e+00> : vector<8x4xf32>
    %116 = tpu.matmul %115, %103, %cst_66 {dimension_numbers = #tpu.dot_dimension_numbers<[1], [0], [0], [1], [0, 0, 1, 1], [], []>} : vector<8x8xbf16>, vector<8x4xbf16>, vector<8x4xf32> -> vector<8x4xf32>
    %117 = arith.truncf %116 : vector<8x4xf32> to vector<8x4xbf16>
    %c0_67 = arith.constant 0 : index
    %c20_68 = arith.constant 20 : index
    %118 = vector.load %arg11[%c0_67, %c20_68] : memref<8x32xbf16, #tpu.memory_space<vmem>>, vector<8x4xbf16>
    tpu.vector_store %arg11[%c0_67, %c20_68], %117 {strides = array<i32>} : memref<8x32xbf16, #tpu.memory_space<vmem>>, vector<8x4xbf16>,
    %c0_69 = arith.constant 0 : index
    %c24 = arith.constant 24 : index
    %119 = vector.load %arg10[%c0_69, %c24] : memref<8x32xbf16, #tpu.memory_space<vmem>>, vector<8x4xbf16>
    %c0_70 = arith.constant 0 : index
    %c24_71 = arith.constant 24 : index
    %120 = vector.load %arg9[%c0_70, %c24_71] : memref<8x64xbf16, #tpu.memory_space<vmem>>, vector<8x4xbf16>
    %c0_72 = arith.constant 0 : index
    %c56 = arith.constant 56 : index
    %121 = vector.load %arg9[%c0_72, %c56] : memref<8x64xbf16, #tpu.memory_space<vmem>>, vector<8x4xbf16>
    %cst_73 = arith.constant dense<0.000000e+00> : vector<8x8xf32>
    %122 = tpu.matmul %119, %120, %cst_73 {dimension_numbers = #tpu.dot_dimension_numbers<[1], [1], [0], [0], [0, 0, 1, 0], [], []>} : vector<8x4xbf16>, vector<8x4xbf16>, vector<8x8xf32> -> vector<8x8xf32>
    %cst_74 = arith.constant dense<0xFF800000> : vector<8xf32>
    %123 = vector.multi_reduction <maximumf>, %122, %cst_74 [1] : vector<8x8xf32> to vector<8xf32>
    %124 = vector.shape_cast %123 : vector<8xf32> to vector<8x1xf32>
    %125 = vector.broadcast %124 : vector<8x1xf32> to vector<8x8xf32>
    %126 = arith.subf %122, %125 : vector<8x8xf32>
    %127 = math.exp %126 : vector<8x8xf32>
    %cst_75 = arith.constant dense<0.000000e+00> : vector<8xf32>
    %128 = vector.multi_reduction <add>, %127, %cst_75 [1] : vector<8x8xf32> to vector<8xf32>
    %129 = vector.shape_cast %128 : vector<8xf32> to vector<8x1xf32>
    %130 = tpu.reciprocal %129 {approx = true} : vector<8x1xf32> -> vector<8x1xf32>
    %131 = vector.broadcast %130 : vector<8x1xf32> to vector<8x8xf32>
    %132 = arith.mulf %127, %131 : vector<8x8xf32>
    %133 = arith.truncf %132 : vector<8x8xf32> to vector<8x8xbf16>
    %cst_76 = arith.constant dense<0.000000e+00> : vector<8x4xf32>
    %134 = tpu.matmul %133, %121, %cst_76 {dimension_numbers = #tpu.dot_dimension_numbers<[1], [0], [0], [1], [0, 0, 1, 1], [], []>} : vector<8x8xbf16>, vector<8x4xbf16>, vector<8x4xf32> -> vector<8x4xf32>
    %135 = arith.truncf %134 : vector<8x4xf32> to vector<8x4xbf16>
    %c0_77 = arith.constant 0 : index
    %c24_78 = arith.constant 24 : index
    %136 = vector.load %arg11[%c0_77, %c24_78] : memref<8x32xbf16, #tpu.memory_space<vmem>>, vector<8x4xbf16>
    tpu.vector_store %arg11[%c0_77, %c24_78], %135 {strides = array<i32>} : memref<8x32xbf16, #tpu.memory_space<vmem>>, vector<8x4xbf16>,
    %c0_79 = arith.constant 0 : index
    %c28 = arith.constant 28 : index
    %137 = vector.load %arg10[%c0_79, %c28] : memref<8x32xbf16, #tpu.memory_space<vmem>>, vector<8x4xbf16>
    %c0_80 = arith.constant 0 : index
    %c28_81 = arith.constant 28 : index
    %138 = vector.load %arg9[%c0_80, %c28_81] : memref<8x64xbf16, #tpu.memory_space<vmem>>, vector<8x4xbf16>
    %c0_82 = arith.constant 0 : index
    %c60 = arith.constant 60 : index
    %139 = vector.load %arg9[%c0_82, %c60] : memref<8x64xbf16, #tpu.memory_space<vmem>>, vector<8x4xbf16>
    %cst_83 = arith.constant dense<0.000000e+00> : vector<8x8xf32>
    %140 = tpu.matmul %137, %138, %cst_83 {dimension_numbers = #tpu.dot_dimension_numbers<[1], [1], [0], [0], [0, 0, 1, 0], [], []>} : vector<8x4xbf16>, vector<8x4xbf16>, vector<8x8xf32> -> vector<8x8xf32>
    %cst_84 = arith.constant dense<0xFF800000> : vector<8xf32>
    %141 = vector.multi_reduction <maximumf>, %140, %cst_84 [1] : vector<8x8xf32> to vector<8xf32>
    %142 = vector.shape_cast %141 : vector<8xf32> to vector<8x1xf32>
    %143 = vector.broadcast %142 : vector<8x1xf32> to vector<8x8xf32>
    %144 = arith.subf %140, %143 : vector<8x8xf32>
    %145 = math.exp %144 : vector<8x8xf32>
    %cst_85 = arith.constant dense<0.000000e+00> : vector<8xf32>
    %146 = vector.multi_reduction <add>, %145, %cst_85 [1] : vector<8x8xf32> to vector<8xf32>
    %147 = vector.shape_cast %146 : vector<8xf32> to vector<8x1xf32>
    %148 = tpu.reciprocal %147 {approx = true} : vector<8x1xf32> -> vector<8x1xf32>
    %149 = vector.broadcast %148 : vector<8x1xf32> to vector<8x8xf32>
    %150 = arith.mulf %145, %149 : vector<8x8xf32>
    %151 = arith.truncf %150 : vector<8x8xf32> to vector<8x8xbf16>
    %cst_86 = arith.constant dense<0.000000e+00> : vector<8x4xf32>
    %152 = tpu.matmul %151, %139, %cst_86 {dimension_numbers = #tpu.dot_dimension_numbers<[1], [0], [0], [1], [0, 0, 1, 1], [], []>} : vector<8x8xbf16>, vector<8x4xbf16>, vector<8x4xf32> -> vector<8x4xf32>
    %153 = arith.truncf %152 : vector<8x4xf32> to vector<8x4xbf16>
    %c0_87 = arith.constant 0 : index
    %c28_88 = arith.constant 28 : index
    %154 = vector.load %arg11[%c0_87, %c28_88] : memref<8x32xbf16, #tpu.memory_space<vmem>>, vector<8x4xbf16>
    tpu.vector_store %arg11[%c0_87, %c28_88], %153 {strides = array<i32>} : memref<8x32xbf16, #tpu.memory_space<vmem>>, vector<8x4xbf16>,
    %c0_89 = arith.constant 0 : index
    %c0_90 = arith.constant 0 : index
    %155 = vector.load %arg11[%c0_89, %c0_90] : memref<8x32xbf16, #tpu.memory_space<vmem>>, vector<8x32xbf16>
    %c0_91 = arith.constant 0 : index
    %c0_92 = arith.constant 0 : index
    %156 = vector.load %arg6[%c0_91, %c0_92] : memref<32x32xbf16, #tpu.memory_space<vmem>>, vector<32x32xbf16>
    %cst_93 = arith.constant dense<0.000000e+00> : vector<8x32xf32>
    %157 = tpu.matmul %155, %156, %cst_93 {dimension_numbers = #tpu.dot_dimension_numbers<[1], [1], [0], [0], [0, 0, 1, 0], [], []>} : vector<8x32xbf16>, vector<32x32xbf16>, vector<8x32xf32> -> vector<8x32xf32>
    %c0_94 = arith.constant 0 : index
    %c0_95 = arith.constant 0 : index
    %158 = vector.load %arg7[%c0_94, %c0_95] : memref<1x32xf32, #tpu.memory_space<vmem>>, vector<1x32xf32>
    %159 = vector.broadcast %158 : vector<1x32xf32> to vector<8x32xf32>
    %160 = arith.addf %157, %159 : vector<8x32xf32>
    %c0_96 = arith.constant 0 : index
    %c0_97 = arith.constant 0 : index
    %c0_98 = arith.constant 0 : index
    %161 = vector.load %arg8[%c0_96, %c0_97, %c0_98] : memref<1x8x32xf32, #tpu.memory_space<vmem>>, vector<1x8x32xf32>
    %162 = vector.shape_cast %161 : vector<1x8x32xf32> to vector<8x32xf32>
    %163 = vector.shape_cast %160 : vector<8x32xf32> to vector<1x8x32xf32>
    tpu.vector_store %arg8[%c0_96, %c0_97, %c0_98], %163 {strides = array<i32>} : memref<1x8x32xf32, #tpu.memory_space<vmem>>, vector<1x8x32xf32>,
    return
  }
  func.func @transform_0(%arg0: i32, %arg1: i32) -> (i32, i32, i32) {
    %c0_i32 = arith.constant 0 : i32
    %c0_i32_0 = arith.constant 0 : i32
    %c0_i32_1 = arith.constant 0 : i32
    return %arg0, %c0_i32, %c0_i32_0 : i32, i32, i32
  }
  func.func @transform_1(%arg0: i32, %arg1: i32) -> (i32, i32, i32) {
    %c0_i32 = arith.constant 0 : i32
    %c0_i32_0 = arith.constant 0 : i32
    return %arg0, %arg1, %c0_i32 : i32, i32, i32
  }
  func.func @transform_2(%arg0: i32, %arg1: i32) -> (i32, i32) {
    %c0_i32 = arith.constant 0 : i32
    %c0_i32_0 = arith.constant 0 : i32
    %c0_i32_1 = arith.constant 0 : i32
    return %c0_i32, %c0_i32_0 : i32, i32
  }
  func.func @transform_3(%arg0: i32, %arg1: i32) -> (i32, i32) {
    %c0_i32 = arith.constant 0 : i32
    %c0_i32_0 = arith.constant 0 : i32
    %c0_i32_1 = arith.constant 0 : i32
    return %c0_i32, %c0_i32_0 : i32, i32
  }
  func.func @transform_4(%arg0: i32, %arg1: i32) -> (i32, i32) {
    %c0_i32 = arith.constant 0 : i32
    %c0_i32_0 = arith.constant 0 : i32
    %c0_i32_1 = arith.constant 0 : i32
    return %c0_i32, %c0_i32_0 : i32, i32
  }
  func.func @transform_5(%arg0: i32, %arg1: i32) -> (i32, i32) {
    %c0_i32 = arith.constant 0 : i32
    %c0_i32_0 = arith.constant 0 : i32
    %c0_i32_1 = arith.constant 0 : i32
    return %c0_i32, %c0_i32_0 : i32, i32
  }
  func.func @transform_6(%arg0: i32, %arg1: i32) -> (i32, i32, i32) {
    %c0_i32 = arith.constant 0 : i32
    %c0_i32_0 = arith.constant 0 : i32
    return %arg0, %arg1, %c0_i32 : i32, i32, i32
  }
}

</mosaic_0001>

<llo_original>
// kernel: tpu_custom_call.1
$region0: #{tpu_custom_call.1}
  #allocation0 [shape = 'u32[]', space=smem, size = 0x4, offset = 0x4, fixed_abs, tag = 'smem constant byte address 0x4 - core index']
  #allocation1 [shape = 'u32[72,128]{1,0:T(1,128)}', space=vmem, size = 0x9000, scoped, tag = 'internal scratch']
  #allocation2 [shape = 'bf16[8,64]{1,0:T(8,128)(2,1)}', space=vmem, size = 0x800, scoped, tag = 'scratch operand']
  #allocation3 [shape = 'bf16[8,32]{1,0:T(8,128)(2,1)}', space=vmem, size = 0x800, scoped, tag = 'scratch operand']
  #allocation4 [shape = 'bf16[8,32]{1,0:T(8,128)(2,1)}', space=vmem, size = 0x800, scoped, tag = 'scratch operand']
  %s0 = inlined_call_operand.vmem [shape: bf16[2,8,32], index: 0, kind: input, shape index: {}]
  %s1 = inlined_call_operand.vmem [shape: bf16[2,8,32], index: 1, kind: input, shape index: {}]
  %s2 = inlined_call_operand.vmem [shape: bf16[32,32], index: 2, kind: input, shape index: {}]
  %s3 = inlined_call_operand.vmem [shape: bf16[64,32], index: 3, kind: input, shape index: {}]
  %s4 = inlined_call_operand.vmem [shape: bf16[32,32], index: 4, kind: input, shape index: {}]
  %s5 = inlined_call_operand.vmem [shape: f32[1,32], index: 5, kind: input, shape index: {}]
  %s6 = inlined_call_operand.hbm [shape: f32[2,8,32], index: 6, kind: output, shape index: {}]
  %s7 = sld [smem:[#allocation0]]
  $region61: #{tpu_custom_call.1} parent=0
    _
  %s9 = ssub.s32 1, %s7
  %s10 = scalar_select 0, %s9, %s7
  $region1: #{tpu_custom_call.1} parent=0
    #allocation5 [shape = 'u8[8192]{0}', space=vmem, size = 0x2000, scoped, tag = 'output window, operand 0']
    #allocation6 [shape = 's32[2]{0}', space=sflag, size = 0x8, scoped, tag = 'scoped memory for tpu_custom_call.1']
    %11 = vsyncpa [#allocation6], 0
    %s12 = scalar_lea.sflag [#allocation6], 1
    %13 = vsyncpa %s12, 0
    loop: start=0, step=1, limit=4
    $region2: #{tpu_custom_call.1} parent=1 // loop_pre_header
      _
    $region3: #{tpu_custom_call.1} parent=1 // loop_header
      %s15 = sphi 0, %s19
      %p16 = scmp.ge.s32.totalorder %s15, 4
      %s22 = sphi 0, %s34
      %s23 = sphi 0, %s30
      %s24 = sphi 0, %s22
      %s25 = sphi 0, %s23
      %s26 = sphi 0, %s24
      %s27 = sphi 0, %s25
      %s37 = sphi 0, %s39
      %s40 = sphi 0, %s37
      %s41 = sphi 0, %s40
      %s57 = sphi 0, %s41
      %s65 = sphi 0, %s67
      %s68 = sphi 0, %s65
      %s69 = sphi 0, %s68
      %s85 = sphi 0, %s69
      %s89 = sphi 0, %s89
      %s91 = sphi 0, %s89
      %s92 = sphi 0, %s91
      %s106 = sphi 0, %s92
      %s110 = sphi 0, %s110
      %s112 = sphi 0, %s110
      %s113 = sphi 0, %s112
      %s127 = sphi 0, %s113
      %s131 = sphi 0, %s131
      %s133 = sphi 0, %s131
      %s134 = sphi 0, %s133
      %s148 = sphi 0, %s134
      %s152 = sphi 0, %s152
      %s154 = sphi 0, %s152
      %s155 = sphi 0, %s154
      %s169 = sphi 0, %s155
      %s177 = sphi 0, %s179
      %s180 = sphi 0, %s177
      %s181 = sphi 0, %s180
      %s197 = sphi 0, %s181
    $region4: #{tpu_custom_call.1} parent=1 // loop_header_branch
      %18 = sbr.rel (%p16) target = $region8
    $region5: #{tpu_custom_call.1} parent=1 // loop_body
      %s20 = ssub.s32 %s15, 1
      %s21 = ssub.s32 %s15, 2
      %s28 = sadd.s32 1, %s23
      %p29 = scmp.ge.s32.totalorder %s28, 1
      %s30 = scalar_select %p29, 0, %s28
      %s31 = sadd.s32 1, %s22
      %s32 = scalar_select %p29, %s31, %s22
      %p33 = scmp.ge.s32.totalorder %s32, 2
      %s34 = scalar_select %p33, 0, %s32
      %s35 = ssub.s32 %s22, %s34
      %p36 = scmp.eq.s32.totalorder %s35, 0
      %s38 = sadd.s32 %s37, 1
      %s39 = scalar_select %p36, %s37, %s38
      %p42 = pneg %p36
      %p43 = scmp.eq.s32.totalorder %s15, 1
      %p44 = por %p42, %p43
      %p45 = scmp.ne.s32.totalorder %s37, %s40
      %p46 = scmp.eq.s32.totalorder %s15, 0
      %p47 = por %p45, %p46
      %p48 = scmp.ne.s32.totalorder %s37, %s40
      %p49 = scmp.eq.s32.totalorder %s20, 1
      %p50 = por %p48, %p49
      %p51 = scmp.ne.s32.totalorder %s40, %s41
      %p52 = scmp.eq.s32.totalorder %s20, 0
      %p53 = por %p51, %p52
      %p54 = scmp.ne.s32.totalorder %s40, %s41
      %p55 = scmp.eq.s32.totalorder %s21, 1
      %p56 = por %p54, %p55
      %p58 = scmp.ne.s32.totalorder %s41, %s57
      %p59 = scmp.eq.s32.totalorder %s21, 0
      %p60 = por %p58, %p59
      %s61 = ssub.s32 %s22, %s34
      %s62 = ssub.s32 %s23, %s30
      %s63 = sor.u32 %s61, %s62
      %p64 = scmp.eq.s32.totalorder %s63, 0
      %s66 = sadd.s32 %s65, 1
      %s67 = scalar_select %p64, %s65, %s66
      %p70 = pneg %p64
      %p71 = scmp.eq.s32.totalorder %s15, 1
      %p72 = por %p70, %p71
      %p73 = scmp.ne.s32.totalorder %s65, %s68
      %p74 = scmp.eq.s32.totalorder %s15, 0
      %p75 = por %p73, %p74
      %p76 = scmp.ne.s32.totalorder %s65, %s68
      %p77 = scmp.eq.s32.totalorder %s20, 1
      %p78 = por %p76, %p77
      %p79 = scmp.ne.s32.totalorder %s68, %s69
      %p80 = scmp.eq.s32.totalorder %s20, 0
      %p81 = por %p79, %p80
      %p82 = scmp.ne.s32.totalorder %s68, %s69
      %p83 = scmp.eq.s32.totalorder %s21, 1
      %p84 = por %p82, %p83
      %p86 = scmp.ne.s32.totalorder %s69, %s85
      %p87 = scmp.eq.s32.totalorder %s21, 0
      %p88 = por %p86, %p87
      %s90 = sadd.s32 %s89, 1
      %p93 = scmp.eq.s32.totalorder %s15, 1
      %p94 = scmp.ne.s32.totalorder %s89, %s91
      %p95 = scmp.eq.s32.totalorder %s15, 0
      %p96 = por %p94, %p95
      %p97 = scmp.ne.s32.totalorder %s89, %s91
      %p98 = scmp.eq.s32.totalorder %s20, 1
      %p99 = por %p97, %p98
      %p100 = scmp.ne.s32.totalorder %s91, %s92
      %p101 = scmp.eq.s32.totalorder %s20, 0
      %p102 = por %p100, %p101
      %p103 = scmp.ne.s32.totalorder %s91, %s92
      %p104 = scmp.eq.s32.totalorder %s21, 1
      %p105 = por %p103, %p104
      %p107 = scmp.ne.s32.totalorder %s92, %s106
      %p108 = scmp.eq.s32.totalorder %s21, 0
      %p109 = por %p107, %p108
      %s111 = sadd.s32 %s110, 1
      %p114 = scmp.eq.s32.totalorder %s15, 1
      %p115 = scmp.ne.s32.totalorder %s110, %s112
      %p116 = scmp.eq.s32.totalorder %s15, 0
      %p117 = por %p115, %p116
      %p118 = scmp.ne.s32.totalorder %s110, %s112
      %p119 = scmp.eq.s32.totalorder %s20, 1
      %p120 = por %p118, %p119
      %p121 = scmp.ne.s32.totalorder %s112, %s113
      %p122 = scmp.eq.s32.totalorder %s20, 0
      %p123 = por %p121, %p122
      %p124 = scmp.ne.s32.totalorder %s112, %s113
      %p125 = scmp.eq.s32.totalorder %s21, 1
      %p126 = por %p124, %p125
      %p128 = scmp.ne.s32.totalorder %s113, %s127
      %p129 = scmp.eq.s32.totalorder %s21, 0
      %p130 = por %p128, %p129
      %s132 = sadd.s32 %s131, 1
      %p135 = scmp.eq.s32.totalorder %s15, 1
      %p136 = scmp.ne.s32.totalorder %s131, %s133
      %p137 = scmp.eq.s32.totalorder %s15, 0
      %p138 = por %p136, %p137
      %p139 = scmp.ne.s32.totalorder %s131, %s133
      %p140 = scmp.eq.s32.totalorder %s20, 1
      %p141 = por %p139, %p140
      %p142 = scmp.ne.s32.totalorder %s133, %s134
      %p143 = scmp.eq.s32.totalorder %s20, 0
      %p144 = por %p142, %p143
      %p145 = scmp.ne.s32.totalorder %s133, %s134
      %p146 = scmp.eq.s32.totalorder %s21, 1
      %p147 = por %p145, %p146
      %p149 = scmp.ne.s32.totalorder %s134, %s148
      %p150 = scmp.eq.s32.totalorder %s21, 0
      %p151 = por %p149, %p150
      %s153 = sadd.s32 %s152, 1
      %p156 = scmp.eq.s32.totalorder %s15, 1
      %p157 = scmp.ne.s32.totalorder %s152, %s154
      %p158 = scmp.eq.s32.totalorder %s15, 0
      %p159 = por %p157, %p158
      %p160 = scmp.ne.s32.totalorder %s152, %s154
      %p161 = scmp.eq.s32.totalorder %s20, 1
      %p162 = por %p160, %p161
      %p163 = scmp.ne.s32.totalorder %s154, %s155
      %p164 = scmp.eq.s32.totalorder %s20, 0
      %p165 = por %p163, %p164
      %p166 = scmp.ne.s32.totalorder %s154, %s155
      %p167 = scmp.eq.s32.totalorder %s21, 1
      %p168 = por %p166, %p167
      %p170 = scmp.ne.s32.totalorder %s155, %s169
      %p171 = scmp.eq.s32.totalorder %s21, 0
      %p172 = por %p170, %p171
      %s173 = ssub.s32 %s22, %s34
      %s174 = ssub.s32 %s23, %s30
      %s175 = sor.u32 %s173, %s174
      %p176 = scmp.eq.s32.totalorder %s175, 0
      %s178 = sadd.s32 %s177, 1
      %s179 = scalar_select %p176, %s177, %s178
      %p182 = pneg %p176
      %p183 = scmp.eq.s32.totalorder %s15, 1
      %p184 = por %p182, %p183
      %p185 = scmp.ne.s32.totalorder %s177, %s180
      %p186 = scmp.eq.s32.totalorder %s15, 0
      %p187 = por %p185, %p186
      %p188 = scmp.ne.s32.totalorder %s177, %s180
      %p189 = scmp.eq.s32.totalorder %s20, 1
      %p190 = por %p188, %p189
      %p191 = scmp.ne.s32.totalorder %s180, %s181
      %p192 = scmp.eq.s32.totalorder %s20, 0
      %p193 = por %p191, %p192
      %p194 = scmp.ne.s32.totalorder %s180, %s181
      %p195 = scmp.eq.s32.totalorder %s21, 1
      %p196 = por %p194, %p195
      %p198 = scmp.ne.s32.totalorder %s181, %s197
      %p199 = scmp.eq.s32.totalorder %s21, 0
      %p200 = por %p198, %p199
      %p201 = scmp.le.s32.totalorder 1, %s15
      %p202 = scmp.lt.s32.totalorder %s15, 3
      %p203 = pnand %p201, %p202
      %p204 = pneg %p203
      // Predicated region
      $region9: #{tpu_custom_call.1} parent=5 // pred_check
        _
      $region10: #{tpu_custom_call.1} parent=5 // pred_check_branch
        %206 = sbr.rel (%p203) target = $region12
      $region11: #{tpu_custom_call.1} parent=5 // pred_region
        %s207 = ssub.s32 %s15, 1
        // Predicated region
        $region13: #{tpu_custom_call.1} parent=11 // pred_check
          %p208 = pneg %p102
        $region14: #{tpu_custom_call.1} parent=11 // pred_check_branch
          %210 = sbr.rel (%p208) target = $region16
        $region15: #{tpu_custom_call.1} parent=11 // pred_region
          _
        $region16: #{tpu_custom_call.1} parent=11 // pred_fallthru
          _
        // Predicated region
        $region17: #{tpu_custom_call.1} parent=11 // pred_check
          %p211 = pneg %p123
        $region18: #{tpu_custom_call.1} parent=11 // pred_check_branch
          %213 = sbr.rel (%p211) target = $region20
        $region19: #{tpu_custom_call.1} parent=11 // pred_region
          _
        $region20: #{tpu_custom_call.1} parent=11 // pred_fallthru
          _
        // Predicated region
        $region21: #{tpu_custom_call.1} parent=11 // pred_check
          %p214 = pneg %p144
        $region22: #{tpu_custom_call.1} parent=11 // pred_check_branch
          %216 = sbr.rel (%p214) target = $region24
        $region23: #{tpu_custom_call.1} parent=11 // pred_region
          _
        $region24: #{tpu_custom_call.1} parent=11 // pred_fallthru
          _
        // Predicated region
        $region25: #{tpu_custom_call.1} parent=11 // pred_check
          %p217 = pneg %p165
        $region26: #{tpu_custom_call.1} parent=11 // pred_check_branch
          %219 = sbr.rel (%p217) target = $region28
        $region27: #{tpu_custom_call.1} parent=11 // pred_region
          _
        $region28: #{tpu_custom_call.1} parent=11 // pred_fallthru
          _
      $region12: #{tpu_custom_call.1} parent=5 // pred_fallthru
        _
      %p220 = scmp.lt.s32.totalorder %s15, 2
      // Predicated region
      $region29: #{tpu_custom_call.1} parent=5 // pred_check
        %p221 = pneg %p220
      $region30: #{tpu_custom_call.1} parent=5 // pred_check_branch
        %223 = sbr.rel (%p221) target = $region32
      $region31: #{tpu_custom_call.1} parent=5 // pred_region
        // Predicated region
        $region33: #{tpu_custom_call.1} parent=31 // pred_check
          %p224 = pneg %p47
        $region34: #{tpu_custom_call.1} parent=31 // pred_check_branch
          %226 = sbr.rel (%p224) target = $region36
        $region35: #{tpu_custom_call.1} parent=31 // pred_region
          %p227 = scmp.lt.s32.totalorder %s22, 1
          %s228 = scalar_select %p227, %s22, 1
          %s229 = smul.addr %s228, 4
          %s230 = scalar_lea.vmem %s0, %s229
        $region36: #{tpu_custom_call.1} parent=31 // pred_fallthru
          _
        // Predicated region
        $region37: #{tpu_custom_call.1} parent=31 // pred_check
          %p231 = pneg %p75
        $region38: #{tpu_custom_call.1} parent=31 // pred_check_branch
          %233 = sbr.rel (%p231) target = $region40
        $region39: #{tpu_custom_call.1} parent=31 // pred_region
          %p234 = scmp.lt.s32.totalorder %s22, 1
          %s235 = scalar_select %p234, %s22, 1
          %p236 = scmp.lt.s32.totalorder %s23, 0
          %s237 = scalar_select %p236, %s23, 0
          %s238 = sadd.s32 %s237, %s235
          %s239 = smul.addr %s238, 4
          %s240 = scalar_lea.vmem %s1, %s239
        $region40: #{tpu_custom_call.1} parent=31 // pred_fallthru
          _
      $region32: #{tpu_custom_call.1} parent=5 // pred_fallthru
        _
      %p241 = scmp.le.s32.totalorder 1, %s15
      %p242 = scmp.lt.s32.totalorder %s15, 3
      %p243 = pnand %p241, %p242
      %p244 = pneg %p243
      // Predicated region
      $region41: #{tpu_custom_call.1} parent=5 // pred_check
        _
      $region42: #{tpu_custom_call.1} parent=5 // pred_check_branch
        %246 = sbr.rel (%p243) target = $region44
      $region43: #{tpu_custom_call.1} parent=5 // pred_region
        %s247 = ssub.s32 %s15, 1
        %p248 = scmp.lt.s32.totalorder %s24, 1
        %s249 = scalar_select %p248, %s24, 1
        %s250 = smul.addr %s249, 4
        %s251 = scalar_lea.vmem %s0, %s250
        %p252 = pneg %p53
        %p253 = pneg %p50
        %p254 = scmp.lt.s32.totalorder %s24, 1
        %s255 = scalar_select %p254, %s24, 1
        %p256 = scmp.lt.s32.totalorder %s25, 0
        %s257 = scalar_select %p256, %s25, 0
        %s258 = sadd.s32 %s257, %s255
        %s259 = smul.addr %s258, 4
        %s260 = scalar_lea.vmem %s1, %s259
        %p261 = pneg %p81
        %p262 = pneg %p78
        %p263 = pneg %p102
        %p264 = pneg %p99
        %p265 = pneg %p123
        %p266 = pneg %p120
        %p267 = pneg %p144
        %p268 = pneg %p141
        %p269 = pneg %p165
        %p270 = pneg %p162
        %p271 = pneg %p193
        %p272 = pneg %p190
        %s273 = sand.u32 %s180, 1
        %s274 = scalar_lea.sflag [#allocation6], %s273
        %s275 = sand.u32 %s180, 1
        %s276 = smul.addr %s275, 8
        %s277 = scalar_lea.vmem [#allocation5], %s276
        %p278 = scmp.lt.s32.totalorder %s24, 1
        %s279 = scalar_select %p278, %s24, 1
        %s280 = smul.addr %s279, 4
        %s281 = scalar_lea.vmem %s0, %s280
        %p282 = scmp.lt.s32.totalorder %s24, 1
        %s283 = scalar_select %p282, %s24, 1
        %p284 = scmp.lt.s32.totalorder %s25, 0
        %s285 = scalar_select %p284, %s25, 0
        %s286 = sadd.s32 %s285, %s283
        %s287 = smul.addr %s286, 4
        %s288 = scalar_lea.vmem %s1, %s287
        %p290 = scmp.eq.s32.totalorder %s25, 0
        // Predicated region
        $region45: #{tpu_custom_call.1} parent=43 // pred_check
          %p291 = pneg %p290
        $region46: #{tpu_custom_call.1} parent=43 // pred_check_branch
          %293 = sbr.rel (%p291) target = $region48
        $region47: #{tpu_custom_call.1} parent=43 // pred_region
          %v294 = vld [vmem:[%s281] sm:$0xf]
          %v295 = vld [vmem:[%s3] sm:$0xf]
          %v296 = vld [vmem:[%s3 + $0x4] sm:$0xf]
          %v297 = vld [vmem:[%s3 + $0x8] sm:$0xf]
          %v298 = vld [vmem:[%s3 + $0xc] sm:$0xf]
          %v299 = vld [vmem:[%s3 + $0x10] sm:$0xf]
          %v300 = vld [vmem:[%s3 + $0x14] sm:$0xf]
          %v301 = vld [vmem:[%s3 + $0x18] sm:$0xf]
          %v302 = vld [vmem:[%s3 + $0x1c] sm:$0xf]
          %v311 = vunpack.c.l.b16 %v295
          %v312 = vunpack.c.l.b16 %v296
          %v313 = vunpack.c.l.b16 %v297
          %v314 = vunpack.c.l.b16 %v298
          %v315 = vunpack.c.l.b16 %v299
          %v316 = vunpack.c.l.b16 %v300
          %v317 = vunpack.c.l.b16 %v301
          %v318 = vunpack.c.l.b16 %v302
          %v319 = vpack.c.b16 %v312, %v311
          %v320 = vpack.c.b16 %v314, %v313
          %v321 = vpack.c.b16 %v316, %v315
          %v322 = vpack.c.b16 %v318, %v317
          %vm323 = vcmask 261120
          %v325 = vsel %vm323, %v294, 0
          %v328 = vsel %vm323, %v319, 0
          %v331 = vsel %vm323, %v320, 0
          %v334 = vsel %vm323, %v321, 0
          %v337 = vsel %vm323, %v322, 0
          %339 = vmatpush.bf16.xpose.msra.mxu0 0
          %340 = vmatpush.bf16.xpose.msra.mxu0 0
          %341 = vmatpush.bf16.xpose.msra.mxu0 0
          %342 = vmatpush.bf16.xpose.msra.mxu0 0
          %343 = vmatpush.bf16.xpose.msra.mxu0 %v337
          %344 = vmatpush.bf16.xpose.msra.mxu0 %v334
          %345 = vmatpush.bf16.xpose.msra.mxu0 %v331
          %346 = vmatpush.bf16.xpose.msra.mxu0 %v328
          %347 = vmatmul.bf16.gmra.mxu0 %v325
          %v348 = vpop.f32.mrf.mxu0
          %v349 = vadd.f32 0.0, %v348
          %v350 = vpop.f32.mrf.mxu0
          %351 = vdwg.mxu0
          %v352 = vpack.c.bf16 %v349, %v349
          %vm353 = vcmask 519168
          %354 = vst.msk [vmem:[#allocation2] sm:$0xf] %vm353, %v352
        $region48: #{tpu_custom_call.1} parent=43 // pred_fallthru
          _
        %v355 = vld [vmem:[%s288] sm:$0xf]
        %v356 = vld [vmem:[%s2] sm:$0xf]
        %v357 = vld [vmem:[%s2 + $0x4] sm:$0xf]
        %v358 = vld [vmem:[%s2 + $0x8] sm:$0xf]
        %v359 = vld [vmem:[%s2 + $0xc] sm:$0xf]
        %v364 = vunpack.c.l.b16 %v356
        %v365 = vunpack.c.l.b16 %v357
        %v366 = vunpack.c.l.b16 %v358
        %v367 = vunpack.c.l.b16 %v359
        %v368 = vpack.c.b16 %v365, %v364
        %v369 = vpack.c.b16 %v367, %v366
        %vm370 = vcmask 261120
        %v372 = vsel %vm370, %v355, 0
        %v375 = vsel %vm370, %v368, 0
        %v378 = vsel %vm370, %v369, 0
        %380 = vmatpush.bf16.xpose.msra.mxu0 0
        %381 = vmatpush.bf16.xpose.msra.mxu0 0
        %382 = vmatpush.bf16.xpose.msra.mxu0 0
        %383 = vmatpush.bf16.xpose.msra.mxu0 0
        %384 = vmatpush.bf16.xpose.msra.mxu0 0
        %385 = vmatpush.bf16.xpose.msra.mxu0 0
        %386 = vmatpush.bf16.xpose.msra.mxu0 %v378
        %387 = vmatpush.bf16.xpose.msra.mxu0 %v375
        %388 = vmatmul.bf16.gmra.mxu0 %v372
        %v389 = vpop.f32.mrf.mxu0
        %v390 = vadd.f32 0.0, %v389
        %v391 = vpop.f32.mrf.mxu0
        %392 = vdwg.mxu0
        %v393 = vmul.f32 %v390, 0.5
        %v394 = vpack.c.bf16 %v393, %v393
        %vm395 = vcmask 257024
        %396 = vst.msk [vmem:[#allocation3] sm:$0xf] %vm395, %v394
        %v397 = vld [vmem:[#allocation3] sm:$0xf]
        %v398 = vld [vmem:[#allocation2] sm:$0xf]
        %vm399 = vcmask 31744
        %v401 = vsel %vm399, %v397, 0
        %v404 = vsel %vm399, %v398, 0
        %406 = vmatpush.bf16.xpose.msra.mxu0 0
        %407 = vmatpush.bf16.xpose.msra.mxu0 0
        %408 = vmatpush.bf16.xpose.msra.mxu0 0
        %409 = vmatpush.bf16.xpose.msra.mxu0 0
        %410 = vmatpush.bf16.xpose.msra.mxu0 0
        %411 = vmatpush.bf16.xpose.msra.mxu0 0
        %412 = vmatpush.bf16.xpose.msra.mxu0 0
        %413 = vmatpush.bf16.xpose.msra.mxu0 %v404
        %414 = vmatmul.bf16.gmra.mxu0 %v401
        %v415 = vpop.f32.mrf.mxu0
        %v416 = vadd.f32 0.0, %v415
        %v417 = vpop.f32.mrf.mxu0
        %418 = vdwg.mxu0
        %vm419 = vcmask 64512
        %v420 = vsel %vm419, %v416, -inf
        %421 = vmax.xlane.f32.xlu0 %v420
        %v422 = vpop.xlane.xlu0 %421
        %v423 = vsub.f32 %v416, %v422
        %v424 = vmul.f32 %v423, 1.442695
        %v425 = vpow.pop %v424
        %v426 = vsel %vm419, %v425, 0.0
        %427 = vadd.xlane.f32.xlu0 %v426
        %v428 = vpop.xlane.xlu0 %427
        %v429 = vrcp.pop %v428
        %v430 = vmul.f32 %v425, %v429
        %v431 = vpack.c.bf16 %v430, %v430
        %v433 = vunpack.c.l.b16 %v398
        %v434 = vpack.c.b16 %v433, %v433
        %435 = vrot.lane.b32.xlu0 %v434, 96
        %v436 = vpop.permute.xlu0 %435
        %v438 = vsel %vm419, %v431, 0
        %vm440 = vcmask 1043456
        %v442 = vsel %vm440, %v436, 0
        %444 = vmatpush.bf16.msra.mxu0 0
        %445 = vmatpush.bf16.msra.mxu0 0
        %446 = vmatpush.bf16.msra.mxu0 0
        %447 = vmatpush.bf16.msra.mxu0 0
        %448 = vmatpush.bf16.msra.mxu0 0
        %449 = vmatpush.bf16.msra.mxu0 0
        %450 = vmatpush.bf16.msra.mxu0 0
        %451 = vmatpush.bf16.msra.mxu0 %v442
        %452 = vmatmul.bf16.gmra.mxu0 %v438
        %v453 = vpop.f32.mrf.mxu0
        %v454 = vadd.f32 0.0, %v453
        %v455 = vpop.f32.mrf.mxu0
        %456 = vdwg.mxu0
        %v457 = vpack.c.bf16 %v454, %v454
        %vm458 = vcmask 27648
        %459 = vst.msk [vmem:[#allocation4] sm:$0xf] %vm458, %v457
        %v460 = vld [vmem:[#allocation3] sm:$0xf]
        %v461 = vld [vmem:[#allocation2] sm:$0xf]
        %v463 = vunpack.c.l.b16 %v460
        %v464 = vpack.c.b16 %v463, %v463
        %465 = vrot.lane.b32.xlu0 %v464, 124
        %v466 = vpop.permute.xlu0 %465
        %v468 = vunpack.c.l.b16 %v461
        %v469 = vpack.c.b16 %v468, %v468
        %470 = vrot.lane.b32.xlu0 %v469, 124
        %v471 = vpop.permute.xlu0 %470
        %v473 = vsel %vm399, %v466, 0
        %v476 = vsel %vm399, %v471, 0
        %478 = vmatpush.bf16.xpose.msra.mxu0 0
        %479 = vmatpush.bf16.xpose.msra.mxu0 0
        %480 = vmatpush.bf16.xpose.msra.mxu0 0
        %481 = vmatpush.bf16.xpose.msra.mxu0 0
        %482 = vmatpush.bf16.xpose.msra.mxu0 0
        %483 = vmatpush.bf16.xpose.msra.mxu0 0
        %484 = vmatpush.bf16.xpose.msra.mxu0 0
        %485 = vmatpush.bf16.xpose.msra.mxu0 %v476
        %486 = vmatmul.bf16.gmra.mxu0 %v473
        %v487 = vpop.f32.mrf.mxu0
        %v488 = vadd.f32 0.0, %v487
        %v489 = vpop.f32.mrf.mxu0
        %490 = vdwg.mxu0
        %v491 = vsel %vm419, %v488, -inf
        %492 = vmax.xlane.f32.xlu0 %v491
        %v493 = vpop.xlane.xlu0 %492
        %v494 = vsub.f32 %v488, %v493
        %v495 = vmul.f32 %v494, 1.442695
        %v496 = vpow.pop %v495
        %v497 = vsel %vm419, %v496, 0.0
        %498 = vadd.xlane.f32.xlu0 %v497
        %v499 = vpop.xlane.xlu0 %498
        %v500 = vrcp.pop %v499
        %v501 = vmul.f32 %v496, %v500
        %v502 = vpack.c.bf16 %v501, %v501
        %503 = vrot.lane.b32.xlu0 %v469, 92
        %v504 = vpop.permute.xlu0 %503
        %v506 = vsel %vm419, %v502, 0
        %v509 = vsel %vm440, %v504, 0
        %511 = vmatpush.bf16.msra.mxu0 0
        %512 = vmatpush.bf16.msra.mxu0 0
        %513 = vmatpush.bf16.msra.mxu0 0
        %514 = vmatpush.bf16.msra.mxu0 0
        %515 = vmatpush.bf16.msra.mxu0 0
        %516 = vmatpush.bf16.msra.mxu0 0
        %517 = vmatpush.bf16.msra.mxu0 0
        %518 = vmatpush.bf16.msra.mxu0 %v509
        %519 = vmatmul.bf16.gmra.mxu0 %v506
        %v520 = vpop.f32.mrf.mxu0
        %v521 = vadd.f32 0.0, %v520
        %v522 = vpop.f32.mrf.mxu0
        %523 = vdwg.mxu0
        %v524 = vpack.c.bf16 %v521, %v521
        %526 = vrot.lane.b32.xlu0 %v524, 4
        %v527 = vpop.permute.xlu0 %526
        %vm529 = vcmask 60448
        %530 = vst.msk [vmem:[#allocation4] sm:$0xf] %vm529, %v527
        %v531 = vld [vmem:[#allocation3] sm:$0xf]
        %v532 = vld [vmem:[#allocation2] sm:$0xf]
        %v534 = vunpack.c.l.b16 %v531
        %v535 = vpack.c.b16 %v534, %v534
        %536 = vrot.lane.b32.xlu0 %v535, 120
        %v537 = vpop.permute.xlu0 %536
        %v539 = vunpack.c.l.b16 %v532
        %v540 = vpack.c.b16 %v539, %v539
        %541 = vrot.lane.b32.xlu0 %v540, 120
        %v542 = vpop.permute.xlu0 %541
        %v544 = vsel %vm399, %v537, 0
        %v547 = vsel %vm399, %v542, 0
        %549 = vmatpush.bf16.xpose.msra.mxu0 0
        %550 = vmatpush.bf16.xpose.msra.mxu0 0
        %551 = vmatpush.bf16.xpose.msra.mxu0 0
        %552 = vmatpush.bf16.xpose.msra.mxu0 0
        %553 = vmatpush.bf16.xpose.msra.mxu0 0
        %554 = vmatpush.bf16.xpose.msra.mxu0 0
        %555 = vmatpush.bf16.xpose.msra.mxu0 0
        %556 = vmatpush.bf16.xpose.msra.mxu0 %v547
        %557 = vmatmul.bf16.gmra.mxu0 %v544
        %v558 = vpop.f32.mrf.mxu0
        %v559 = vadd.f32 0.0, %v558
        %v560 = vpop.f32.mrf.mxu0
        %561 = vdwg.mxu0
        %v562 = vsel %vm419, %v559, -inf
        %563 = vmax.xlane.f32.xlu0 %v562
        %v564 = vpop.xlane.xlu0 %563
        %v565 = vsub.f32 %v559, %v564
        %v566 = vmul.f32 %v565, 1.442695
        %v567 = vpow.pop %v566
        %v568 = vsel %vm419, %v567, 0.0
        %569 = vadd.xlane.f32.xlu0 %v568
        %v570 = vpop.xlane.xlu0 %569
        %v571 = vrcp.pop %v570
        %v572 = vmul.f32 %v567, %v571
        %v573 = vpack.c.bf16 %v572, %v572
        %574 = vrot.lane.b32.xlu0 %v540, 88
        %v575 = vpop.permute.xlu0 %574
        %v577 = vsel %vm419, %v573, 0
        %v580 = vsel %vm440, %v575, 0
        %582 = vmatpush.bf16.msra.mxu0 0
        %583 = vmatpush.bf16.msra.mxu0 0
        %584 = vmatpush.bf16.msra.mxu0 0
        %585 = vmatpush.bf16.msra.mxu0 0
        %586 = vmatpush.bf16.msra.mxu0 0
        %587 = vmatpush.bf16.msra.mxu0 0
        %588 = vmatpush.bf16.msra.mxu0 0
        %589 = vmatpush.bf16.msra.mxu0 %v580
        %590 = vmatmul.bf16.gmra.mxu0 %v577
        %v591 = vpop.f32.mrf.mxu0
        %v592 = vadd.f32 0.0, %v591
        %v593 = vpop.f32.mrf.mxu0
        %594 = vdwg.mxu0
        %v595 = vpack.c.bf16 %v592, %v592
        %597 = vrot.lane.b32.xlu0 %v595, 8
        %v598 = vpop.permute.xlu0 %597
        %vm600 = vcmask 93248
        %601 = vst.msk [vmem:[#allocation4] sm:$0xf] %vm600, %v598
        %v602 = vld [vmem:[#allocation3] sm:$0xf]
        %v603 = vld [vmem:[#allocation2] sm:$0xf]
        %v605 = vunpack.c.l.b16 %v602
        %v606 = vpack.c.b16 %v605, %v605
        %607 = vrot.lane.b32.xlu0 %v606, 116
        %v608 = vpop.permute.xlu0 %607
        %v610 = vunpack.c.l.b16 %v603
        %v611 = vpack.c.b16 %v610, %v610
        %612 = vrot.lane.b32.xlu0 %v611, 116
        %v613 = vpop.permute.xlu0 %612
        %v615 = vsel %vm399, %v608, 0
        %v618 = vsel %vm399, %v613, 0
        %620 = vmatpush.bf16.xpose.msra.mxu0 0
        %621 = vmatpush.bf16.xpose.msra.mxu0 0
        %622 = vmatpush.bf16.xpose.msra.mxu0 0
        %623 = vmatpush.bf16.xpose.msra.mxu0 0
        %624 = vmatpush.bf16.xpose.msra.mxu0 0
        %625 = vmatpush.bf16.xpose.msra.mxu0 0
        %626 = vmatpush.bf16.xpose.msra.mxu0 0
        %627 = vmatpush.bf16.xpose.msra.mxu0 %v618
        %628 = vmatmul.bf16.gmra.mxu0 %v615
        %v629 = vpop.f32.mrf.mxu0
        %v630 = vadd.f32 0.0, %v629
        %v631 = vpop.f32.mrf.mxu0
        %632 = vdwg.mxu0
        %v633 = vsel %vm419, %v630, -inf
        %634 = vmax.xlane.f32.xlu0 %v633
        %v635 = vpop.xlane.xlu0 %634
        %v636 = vsub.f32 %v630, %v635
        %v637 = vmul.f32 %v636, 1.442695
        %v638 = vpow.pop %v637
        %v639 = vsel %vm419, %v638, 0.0
        %640 = vadd.xlane.f32.xlu0 %v639
        %v641 = vpop.xlane.xlu0 %640
        %v642 = vrcp.pop %v641
        %v643 = vmul.f32 %v638, %v642
        %v644 = vpack.c.bf16 %v643, %v643
        %645 = vrot.lane.b32.xlu0 %v611, 84
        %v646 = vpop.permute.xlu0 %645
        %v648 = vsel %vm419, %v644, 0
        %v651 = vsel %vm440, %v646, 0
        %653 = vmatpush.bf16.msra.mxu0 0
        %654 = vmatpush.bf16.msra.mxu0 0
        %655 = vmatpush.bf16.msra.mxu0 0
        %656 = vmatpush.bf16.msra.mxu0 0
        %657 = vmatpush.bf16.msra.mxu0 0
        %658 = vmatpush.bf16.msra.mxu0 0
        %659 = vmatpush.bf16.msra.mxu0 0
        %660 = vmatpush.bf16.msra.mxu0 %v651
        %661 = vmatmul.bf16.gmra.mxu0 %v648
        %v662 = vpop.f32.mrf.mxu0
        %v663 = vadd.f32 0.0, %v662
        %v664 = vpop.f32.mrf.mxu0
        %665 = vdwg.mxu0
        %v666 = vpack.c.bf16 %v663, %v663
        %668 = vrot.lane.b32.xlu0 %v666, 12
        %v669 = vpop.permute.xlu0 %668
        %vm671 = vcmask 126048
        %672 = vst.msk [vmem:[#allocation4] sm:$0xf] %vm671, %v669
        %v673 = vld [vmem:[#allocation3] sm:$0xf]
        %v674 = vld [vmem:[#allocation2] sm:$0xf]
        %v676 = vunpack.c.l.b16 %v673
        %v677 = vpack.c.b16 %v676, %v676
        %678 = vrot.lane.b32.xlu0 %v677, 112
        %v679 = vpop.permute.xlu0 %678
        %v681 = vunpack.c.l.b16 %v674
        %v682 = vpack.c.b16 %v681, %v681
        %683 = vrot.lane.b32.xlu0 %v682, 112
        %v684 = vpop.permute.xlu0 %683
        %v686 = vsel %vm399, %v679, 0
        %v689 = vsel %vm399, %v684, 0
        %691 = vmatpush.bf16.xpose.msra.mxu0 0
        %692 = vmatpush.bf16.xpose.msra.mxu0 0
        %693 = vmatpush.bf16.xpose.msra.mxu0 0
        %694 = vmatpush.bf16.xpose.msra.mxu0 0
        %695 = vmatpush.bf16.xpose.msra.mxu0 0
        %696 = vmatpush.bf16.xpose.msra.mxu0 0
        %697 = vmatpush.bf16.xpose.msra.mxu0 0
        %698 = vmatpush.bf16.xpose.msra.mxu0 %v689
        %699 = vmatmul.bf16.gmra.mxu0 %v686
        %v700 = vpop.f32.mrf.mxu0
        %v701 = vadd.f32 0.0, %v700
        %v702 = vpop.f32.mrf.mxu0
        %703 = vdwg.mxu0
        %v704 = vsel %vm419, %v701, -inf
        %705 = vmax.xlane.f32.xlu0 %v704
        %v706 = vpop.xlane.xlu0 %705
        %v707 = vsub.f32 %v701, %v706
        %v708 = vmul.f32 %v707, 1.442695
        %v709 = vpow.pop %v708
        %v710 = vsel %vm419, %v709, 0.0
        %711 = vadd.xlane.f32.xlu0 %v710
        %v712 = vpop.xlane.xlu0 %711
        %v713 = vrcp.pop %v712
        %v714 = vmul.f32 %v709, %v713
        %v715 = vpack.c.bf16 %v714, %v714
        %716 = vrot.lane.b32.xlu0 %v682, 80
        %v717 = vpop.permute.xlu0 %716
        %v719 = vsel %vm419, %v715, 0
        %v722 = vsel %vm440, %v717, 0
        %724 = vmatpush.bf16.msra.mxu0 0
        %725 = vmatpush.bf16.msra.mxu0 0
        %726 = vmatpush.bf16.msra.mxu0 0
        %727 = vmatpush.bf16.msra.mxu0 0
        %728 = vmatpush.bf16.msra.mxu0 0
        %729 = vmatpush.bf16.msra.mxu0 0
        %730 = vmatpush.bf16.msra.mxu0 0
        %731 = vmatpush.bf16.msra.mxu0 %v722
        %732 = vmatmul.bf16.gmra.mxu0 %v719
        %v733 = vpop.f32.mrf.mxu0
        %v734 = vadd.f32 0.0, %v733
        %v735 = vpop.f32.mrf.mxu0
        %736 = vdwg.mxu0
        %v737 = vpack.c.bf16 %v734, %v734
        %739 = vrot.lane.b32.xlu0 %v737, 16
        %v740 = vpop.permute.xlu0 %739
        %vm742 = vcmask 158848
        %743 = vst.msk [vmem:[#allocation4] sm:$0xf] %vm742, %v740
        %v744 = vld [vmem:[#allocation3] sm:$0xf]
        %v745 = vld [vmem:[#allocation2] sm:$0xf]
        %v747 = vunpack.c.l.b16 %v744
        %v748 = vpack.c.b16 %v747, %v747
        %749 = vrot.lane.b32.xlu0 %v748, 108
        %v750 = vpop.permute.xlu0 %749
        %v752 = vunpack.c.l.b16 %v745
        %v753 = vpack.c.b16 %v752, %v752
        %754 = vrot.lane.b32.xlu0 %v753, 108
        %v755 = vpop.permute.xlu0 %754
        %v757 = vsel %vm399, %v750, 0
        %v760 = vsel %vm399, %v755, 0
        %762 = vmatpush.bf16.xpose.msra.mxu0 0
        %763 = vmatpush.bf16.xpose.msra.mxu0 0
        %764 = vmatpush.bf16.xpose.msra.mxu0 0
        %765 = vmatpush.bf16.xpose.msra.mxu0 0
        %766 = vmatpush.bf16.xpose.msra.mxu0 0
        %767 = vmatpush.bf16.xpose.msra.mxu0 0
        %768 = vmatpush.bf16.xpose.msra.mxu0 0
        %769 = vmatpush.bf16.xpose.msra.mxu0 %v760
        %770 = vmatmul.bf16.gmra.mxu0 %v757
        %v771 = vpop.f32.mrf.mxu0
        %v772 = vadd.f32 0.0, %v771
        %v773 = vpop.f32.mrf.mxu0
        %774 = vdwg.mxu0
        %v775 = vsel %vm419, %v772, -inf
        %776 = vmax.xlane.f32.xlu0 %v775
        %v777 = vpop.xlane.xlu0 %776
        %v778 = vsub.f32 %v772, %v777
        %v779 = vmul.f32 %v778, 1.442695
        %v780 = vpow.pop %v779
        %v781 = vsel %vm419, %v780, 0.0
        %782 = vadd.xlane.f32.xlu0 %v781
        %v783 = vpop.xlane.xlu0 %782
        %v784 = vrcp.pop %v783
        %v785 = vmul.f32 %v780, %v784
        %v786 = vpack.c.bf16 %v785, %v785
        %787 = vrot.lane.b32.xlu0 %v753, 76
        %v788 = vpop.permute.xlu0 %787
        %v790 = vsel %vm419, %v786, 0
        %v793 = vsel %vm440, %v788, 0
        %795 = vmatpush.bf16.msra.mxu0 0
        %796 = vmatpush.bf16.msra.mxu0 0
        %797 = vmatpush.bf16.msra.mxu0 0
        %798 = vmatpush.bf16.msra.mxu0 0
        %799 = vmatpush.bf16.msra.mxu0 0
        %800 = vmatpush.bf16.msra.mxu0 0
        %801 = vmatpush.bf16.msra.mxu0 0
        %802 = vmatpush.bf16.msra.mxu0 %v793
        %803 = vmatmul.bf16.gmra.mxu0 %v790
        %v804 = vpop.f32.mrf.mxu0
        %v805 = vadd.f32 0.0, %v804
        %v806 = vpop.f32.mrf.mxu0
        %807 = vdwg.mxu0
        %v808 = vpack.c.bf16 %v805, %v805
        %810 = vrot.lane.b32.xlu0 %v808, 20
        %v811 = vpop.permute.xlu0 %810
        %vm813 = vcmask 191648
        %814 = vst.msk [vmem:[#allocation4] sm:$0xf] %vm813, %v811
        %v815 = vld [vmem:[#allocation3] sm:$0xf]
        %v816 = vld [vmem:[#allocation2] sm:$0xf]
        %v818 = vunpack.c.l.b16 %v815
        %v819 = vpack.c.b16 %v818, %v818
        %820 = vrot.lane.b32.xlu0 %v819, 104
        %v821 = vpop.permute.xlu0 %820
        %v823 = vunpack.c.l.b16 %v816
        %v824 = vpack.c.b16 %v823, %v823
        %825 = vrot.lane.b32.xlu0 %v824, 104
        %v826 = vpop.permute.xlu0 %825
        %v828 = vsel %vm399, %v821, 0
        %v831 = vsel %vm399, %v826, 0
        %833 = vmatpush.bf16.xpose.msra.mxu0 0
        %834 = vmatpush.bf16.xpose.msra.mxu0 0
        %835 = vmatpush.bf16.xpose.msra.mxu0 0
        %836 = vmatpush.bf16.xpose.msra.mxu0 0
        %837 = vmatpush.bf16.xpose.msra.mxu0 0
        %838 = vmatpush.bf16.xpose.msra.mxu0 0
        %839 = vmatpush.bf16.xpose.msra.mxu0 0
        %840 = vmatpush.bf16.xpose.msra.mxu0 %v831
        %841 = vmatmul.bf16.gmra.mxu0 %v828
        %v842 = vpop.f32.mrf.mxu0
        %v843 = vadd.f32 0.0, %v842
        %v844 = vpop.f32.mrf.mxu0
        %845 = vdwg.mxu0
        %v846 = vsel %vm419, %v843, -inf
        %847 = vmax.xlane.f32.xlu0 %v846
        %v848 = vpop.xlane.xlu0 %847
        %v849 = vsub.f32 %v843, %v848
        %v850 = vmul.f32 %v849, 1.442695
        %v851 = vpow.pop %v850
        %v852 = vsel %vm419, %v851, 0.0
        %853 = vadd.xlane.f32.xlu0 %v852
        %v854 = vpop.xlane.xlu0 %853
        %v855 = vrcp.pop %v854
        %v856 = vmul.f32 %v851, %v855
        %v857 = vpack.c.bf16 %v856, %v856
        %858 = vrot.lane.b32.xlu0 %v824, 72
        %v859 = vpop.permute.xlu0 %858
        %v861 = vsel %vm419, %v857, 0
        %v864 = vsel %vm440, %v859, 0
        %866 = vmatpush.bf16.msra.mxu0 0
        %867 = vmatpush.bf16.msra.mxu0 0
        %868 = vmatpush.bf16.msra.mxu0 0
        %869 = vmatpush.bf16.msra.mxu0 0
        %870 = vmatpush.bf16.msra.mxu0 0
        %871 = vmatpush.bf16.msra.mxu0 0
        %872 = vmatpush.bf16.msra.mxu0 0
        %873 = vmatpush.bf16.msra.mxu0 %v864
        %874 = vmatmul.bf16.gmra.mxu0 %v861
        %v875 = vpop.f32.mrf.mxu0
        %v876 = vadd.f32 0.0, %v875
        %v877 = vpop.f32.mrf.mxu0
        %878 = vdwg.mxu0
        %v879 = vpack.c.bf16 %v876, %v876
        %881 = vrot.lane.b32.xlu0 %v879, 24
        %v882 = vpop.permute.xlu0 %881
        %vm884 = vcmask 224448
        %885 = vst.msk [vmem:[#allocation4] sm:$0xf] %vm884, %v882
        %v886 = vld [vmem:[#allocation3] sm:$0xf]
        %v887 = vld [vmem:[#allocation2] sm:$0xf]
        %v889 = vunpack.c.l.b16 %v886
        %v890 = vpack.c.b16 %v889, %v889
        %891 = vrot.lane.b32.xlu0 %v890, 100
        %v892 = vpop.permute.xlu0 %891
        %v894 = vunpack.c.l.b16 %v887
        %v895 = vpack.c.b16 %v894, %v894
        %896 = vrot.lane.b32.xlu0 %v895, 100
        %v897 = vpop.permute.xlu0 %896
        %v899 = vsel %vm399, %v892, 0
        %v902 = vsel %vm399, %v897, 0
        %904 = vmatpush.bf16.xpose.msra.mxu0 0
        %905 = vmatpush.bf16.xpose.msra.mxu0 0
        %906 = vmatpush.bf16.xpose.msra.mxu0 0
        %907 = vmatpush.bf16.xpose.msra.mxu0 0
        %908 = vmatpush.bf16.xpose.msra.mxu0 0
        %909 = vmatpush.bf16.xpose.msra.mxu0 0
        %910 = vmatpush.bf16.xpose.msra.mxu0 0
        %911 = vmatpush.bf16.xpose.msra.mxu0 %v902
        %912 = vmatmul.bf16.gmra.mxu0 %v899
        %v913 = vpop.f32.mrf.mxu0
        %v914 = vadd.f32 0.0, %v913
        %v915 = vpop.f32.mrf.mxu0
        %916 = vdwg.mxu0
        %v917 = vsel %vm419, %v914, -inf
        %918 = vmax.xlane.f32.xlu0 %v917
        %v919 = vpop.xlane.xlu0 %918
        %v920 = vsub.f32 %v914, %v919
        %v921 = vmul.f32 %v920, 1.442695
        %v922 = vpow.pop %v921
        %v923 = vsel %vm419, %v922, 0.0
        %924 = vadd.xlane.f32.xlu0 %v923
        %v925 = vpop.xlane.xlu0 %924
        %v926 = vrcp.pop %v925
        %v927 = vmul.f32 %v922, %v926
        %v928 = vpack.c.bf16 %v927, %v927
        %929 = vrot.lane.b32.xlu0 %v895, 68
        %v930 = vpop.permute.xlu0 %929
        %v932 = vsel %vm419, %v928, 0
        %v935 = vsel %vm440, %v930, 0
        %937 = vmatpush.bf16.msra.mxu0 0
        %938 = vmatpush.bf16.msra.mxu0 0
        %939 = vmatpush.bf16.msra.mxu0 0
        %940 = vmatpush.bf16.msra.mxu0 0
        %941 = vmatpush.bf16.msra.mxu0 0
        %942 = vmatpush.bf16.msra.mxu0 0
        %943 = vmatpush.bf16.msra.mxu0 0
        %944 = vmatpush.bf16.msra.mxu0 %v935
        %945 = vmatmul.bf16.gmra.mxu0 %v932
        %v946 = vpop.f32.mrf.mxu0
        %v947 = vadd.f32 0.0, %v946
        %v948 = vpop.f32.mrf.mxu0
        %949 = vdwg.mxu0
        %v950 = vpack.c.bf16 %v947, %v947
        %952 = vrot.lane.b32.xlu0 %v950, 28
        %v953 = vpop.permute.xlu0 %952
        %vm955 = vcmask 257248
        %956 = vst.msk [vmem:[#allocation4] sm:$0xf] %vm955, %v953
        %v957 = vld [vmem:[#allocation4] sm:$0xf]
        %v958 = vld [vmem:[%s4] sm:$0xf]
        %v959 = vld [vmem:[%s4 + $0x4] sm:$0xf]
        %v960 = vld [vmem:[%s4 + $0x8] sm:$0xf]
        %v961 = vld [vmem:[%s4 + $0xc] sm:$0xf]
        %v962 = vld [vmem:[%s5] sm:$0x1]
        %v964 = vperm.slane %v962, 0
        %v970 = vunpack.c.l.b16 %v958
        %v971 = vunpack.c.l.b16 %v959
        %v972 = vunpack.c.l.b16 %v960
        %v973 = vunpack.c.l.b16 %v961
        %v974 = vpack.c.b16 %v971, %v970
        %v975 = vpack.c.b16 %v973, %v972
        %v977 = vsel %vm370, %v957, 0
        %v980 = vsel %vm370, %v974, 0
        %v983 = vsel %vm370, %v975, 0
        %985 = vmatpush.bf16.xpose.msra.mxu0 0
        %986 = vmatpush.bf16.xpose.msra.mxu0 0
        %987 = vmatpush.bf16.xpose.msra.mxu0 0
        %988 = vmatpush.bf16.xpose.msra.mxu0 0
        %989 = vmatpush.bf16.xpose.msra.mxu0 0
        %990 = vmatpush.bf16.xpose.msra.mxu0 0
        %991 = vmatpush.bf16.xpose.msra.mxu0 %v983
        %992 = vmatpush.bf16.xpose.msra.mxu0 %v980
        %993 = vmatmul.bf16.gmra.mxu0 %v977
        %v994 = vpop.f32.mrf.mxu0
        %v995 = vadd.f32 %v964, %v994
        %v996 = vpop.f32.mrf.mxu0
        %997 = vdwg.mxu0
        %998 = vst.msk [vmem:[%s277] sm:$0xff] %vm370, %v995
        %s999 = sand.u32 %s180, 1
        %s1000 = scalar_lea.sflag [#allocation6], %s999
        %s1001 = sand.u32 %s180, 1
        %s1002 = smul.addr %s1001, 8
        %s1003 = scalar_lea.vmem [#allocation5], %s1002
        // Predicated region
        $region49: #{tpu_custom_call.1} parent=43 // pred_check
          %p1004 = pneg %p190
        $region50: #{tpu_custom_call.1} parent=43 // pred_check_branch
          %1006 = sbr.rel (%p1004) target = $region52
        $region51: #{tpu_custom_call.1} parent=43 // pred_region
          %1008 = vsyncadd %s1000, 0
          %s1009 = sadd.s32 %s25, %s24
          %s1010 = smul.addr %s1009, 8
          %s1011 = scalar_lea.hbm %s6, %s1010
          %s1013 = sshll.u32 %s1003, 4
          %s1014 = int_to_ptr.vmem [resolvable:$true] %s1013
          %s1015 = sshll.u32 %s1011, 4
          %s1016 = int_to_ptr.hbm [resolvable:$true] %s1015
          %1018 = dma.vmem_to_hbm [thread:$0]  %s1014, 128, %s1016, %s1000
        $region52: #{tpu_custom_call.1} parent=43 // pred_fallthru
          _
      $region44: #{tpu_custom_call.1} parent=5 // pred_fallthru
        _
      %p1019 = scmp.le.s32.totalorder 2, %s15
      // Predicated region
      $region53: #{tpu_custom_call.1} parent=5 // pred_check
        %p1020 = pneg %p1019
      $region54: #{tpu_custom_call.1} parent=5 // pred_check_branch
        %1022 = sbr.rel (%p1020) target = $region56
      $region55: #{tpu_custom_call.1} parent=5 // pred_region
        %s1023 = ssub.s32 %s15, 2
        // Predicated region
        $region57: #{tpu_custom_call.1} parent=55 // pred_check
          %p1024 = pneg %p196
        $region58: #{tpu_custom_call.1} parent=55 // pred_check_branch
          %1026 = sbr.rel (%p1024) target = $region60
        $region59: #{tpu_custom_call.1} parent=55 // pred_region
          %s1027 = sand.u32 %s181, 1
          %s1028 = scalar_lea.sflag [#allocation6], %s1027
          %s1029 = sand.u32 %s181, 1
          %s1030 = smul.addr %s1029, 8
          %s1031 = scalar_lea.vmem [#allocation5], %s1030
          %1033 = dma.done %s1028, 128
        $region60: #{tpu_custom_call.1} parent=55 // pred_fallthru
          _
      $region56: #{tpu_custom_call.1} parent=5 // pred_fallthru
        _
    $region6: #{tpu_custom_call.1} parent=1 // loop_footer
      %s19 = sadd.s32 1, %s15
    $region7: #{tpu_custom_call.1} parent=1 // loop_footer_branch
      %14 = sbr.rel target = $region3
    $region8: #{tpu_custom_call.1} parent=1 // loop_exit
      _
    %1034 = vsyncpa [#allocation6], 1
    %s1035 = scalar_lea.sflag [#allocation6], 1
    %1036 = vsyncpa %s1035, 1

</llo_original>
